<compile_context>
chip_gen: v7x
topology: tpu7x:2x2x1
jax: 0.10.0
libtpu: 0.0.40
codegen_flags: <defaults>
</compile_context>

<pallas_src>
import functools
import math

import jax
import jax.numpy as jnp
import numpy as np
from jax.experimental import pallas as pl
from jax.experimental.pallas import tpu as pltpu

_EPS = 1e-8


# --------------------------------------------------------------------------- #
# Helpers
# --------------------------------------------------------------------------- #
def _round_up(x, m):
    return ((x + m - 1) // m) * m


def _cdiv(a, b):
    return -(-a // b)


def _sylvester_hadamard(sz):
    """Sylvester construction of a sz x sz Hadamard matrix (sz = power of 2)."""
    assert sz > 0 and sz & (sz - 1) == 0
    h = np.array([[1.0]], dtype=np.float32)
    while h.shape[0] < sz:
        h = np.block([[h, h], [h, -h]])
    return h


def _vmem_capacity_bytes():
    """Per-core VMEM capacity; fall back to 64 MiB (v7x per-core) if unknown."""
    try:
        cap = getattr(pltpu.get_tpu_info(), "vmem_capacity_bytes", None)
        if cap:
            return int(cap)
    except Exception:
        pass
    return 64 * 1024 * 1024


def _pick_tb(batch, block_b, per_row_bytes, fixed_bytes, budget):
    """Pick a batch tile: big, 8/256-aligned, VMEM-fitting, >=2 grid steps if
    the batch allows it (v7x megacore), and dividing B when possible (so x is
    never copied just to pad rows)."""
    tb = min(block_b, batch)
    if tb >= 256:
        tb = (tb // 256) * 256
    else:
        tb = max(8, (tb // 8) * 8)
    if batch >= 16 and _cdiv(batch, tb) < 2:
        tb = max(8, _round_up(_cdiv(batch, 2), 8))
    while tb > 8 and fixed_bytes + tb * per_row_bytes > budget:
        tb = max(8, ((tb // 2) // 8) * 8)
    for cand in range(tb, max(8, (3 * tb) // 4) - 1, -8):
        if batch % cand == 0:
            tb = cand
            break
    return tb


# --------------------------------------------------------------------------- #
# Kernels
# --------------------------------------------------------------------------- #
def _hadamard_proj_kernel_resident(neg_scale_ref, x_ref, wt_ref, b_ref, o_ref):
    # neg_scale_ref: SMEM (1, 1)     holds -scale
    # x_ref:         VMEM (tb, D_in)
    # wt_ref:        VMEM (D_in, D_out_pad)   resident pre-transposed weight
    # b_ref:         VMEM (1, D_out_pad)
    # o_ref:         VMEM (tb, D_out_pad)
    x = x_ref[...]
    if x.dtype != jnp.float32:
        x = x.astype(jnp.float32)
    w = wt_ref[...]
    if w.dtype != jnp.float32:            # bf16-stored +-1 weights upcast exactly
        w = w.astype(jnp.float32)

    ss = jnp.sum(x * x, axis=-1, keepdims=True)                      # (tb, 1)
    rf = neg_scale_ref[0, 0] * pl.reciprocal(jnp.sqrt(ss) + _EPS, approx=False)

    # Apply the per-row factor on the smaller side of the matmul.
    if o_ref.shape[-1] <= x.shape[-1]:
        proj = jnp.dot(x, w, preferred_element_type=jnp.float32)
        out = proj * rf + b_ref[...]
    else:
        proj = jnp.dot(x * rf, w, preferred_element_type=jnp.float32)
        out = proj + b_ref[...]
    o_ref[...] = out.astype(o_ref.dtype)


def _hadamard_proj_kernel_ktiled(neg_scale_ref, x_ref, wt_ref, b_ref, o_ref,
                                 acc_ref, ss_ref):
    # Grid: (batch tiles, K tiles); K is last and "arbitrary".
    # acc_ref: VMEM (tb, D_out_pad) f32 accumulator; ss_ref: VMEM (tb, 1) f32.
    k = pl.program_id(1)

    @pl.when(k == 0)
    def _():
        acc_ref[...] = jnp.zeros_like(acc_ref)
        ss_ref[...] = jnp.zeros_like(ss_ref)

    x = x_ref[...]
    if x.dtype != jnp.float32:
        x = x.astype(jnp.float32)
    w = wt_ref[...]
    if w.dtype != jnp.float32:
        w = w.astype(jnp.float32)

    acc_ref[...] += jnp.dot(x, w, preferred_element_type=jnp.float32)
    ss_ref[...] += jnp.sum(x * x, axis=-1, keepdims=True)

    @pl.when(k == pl.num_programs(1) - 1)
    def _():
        rf = neg_scale_ref[0, 0] * pl.reciprocal(jnp.sqrt(ss_ref[...]) + _EPS,
                                                 approx=False)
        o_ref[...] = (acc_ref[...] * rf + b_ref[...]).astype(o_ref.dtype)


# --------------------------------------------------------------------------- #
# Forward wrapper (jitted once per shape; weights/bias are prepared at init)
# --------------------------------------------------------------------------- #
def _hadamard_proj_fwd(x, w_t, bias_p, neg_scale, *, output_size, block_b,
                       vmem_budget_bytes):
    orig_shape = x.shape
    if x.ndim != 2:                      # module normalizes/projects along last dim
        x = x.reshape(-1, orig_shape[-1])
    B, D_in = x.shape
    assert w_t.shape[0] == D_in, "weight was initialized for a different input_size"
    D_out_pad = w_t.shape[1]
    itemsize_w = jnp.dtype(w_t.dtype).itemsize
    out_dtype = x.dtype

    hw_budget = int(0.85 * _vmem_capacity_bytes())
    budget = hw_budget if vmem_budget_bytes is None else int(vmem_budget_bytes)

    # Resident-weight footprint (pipeline double-buffers the constant-index W^T).
    w_resident = 2 * D_in * D_out_pad * itemsize_w
    resident_fixed = w_resident + 2 * D_out_pad * 4
    resident_per_row = (2 * D_in + 2 * D_out_pad) * 4
    use_resident = resident_fixed + 8 * resident_per_row <= budget

    if use_resident:
        tb = _pick_tb(B, block_b, resident_per_row, resident_fixed, budget)
        nb = _cdiv(B, tb)
        B_pad = nb * tb
        x_in = x if B_pad == B else jnp.pad(x, ((0, B_pad - B), (0, 0)))
        footprint = resident_fixed + tb * resident_per_row
        vmem_limit = int(min(hw_budget, max(32 * 1024 * 1024, 2 * footprint)))

        out = pl.pallas_call(
            _hadamard_proj_kernel_resident,
            out_shape=jax.ShapeDtypeStruct((B_pad, D_out_pad), out_dtype),
            grid=(nb,),
            in_specs=[
                pl.BlockSpec(memory_space=pltpu.SMEM),                   # -scale
                pl.BlockSpec((tb, D_in), lambda i: (i, 0)),              # x tile
                pl.BlockSpec((D_in, D_out_pad), lambda i: (0, 0)),       # W^T resident
                pl.BlockSpec((1, D_out_pad), lambda i: (0, 0)),          # bias
            ],
            out_specs=pl.BlockSpec((tb, D_out_pad), lambda i: (i, 0)),
            compiler_params=pltpu.CompilerParams(
                dimension_semantics=("parallel",),
                vmem_limit_bytes=vmem_limit),
        )(neg_scale, x_in, w_t, bias_p)
    else:
        # Streaming path: tile the contraction dim, accumulate in VMEM scratch.
        tk = 128
        for cand in (512, 256, 128):
            need = (2 * cand * D_out_pad * itemsize_w + 2 * D_out_pad * 4
                    + 8 * (2 * cand * 4 + 3 * D_out_pad * 4))
            if need <= budget:
                tk = cand
                break
        D_in_pad = _round_up(D_in, tk)
        if D_in_pad != D_in:             # rare: non-128-aligned D_in at huge sz
            x = jnp.pad(x, ((0, 0), (0, D_in_pad - D_in)))
            w_t = jnp.pad(w_t, ((0, D_in_pad - D_in), (0, 0)))
        nk = D_in_pad // tk

        ktiled_fixed = 2 * tk * D_out_pad * itemsize_w + 2 * D_out_pad * 4
        ktiled_per_row = (2 * tk + 2 * D_out_pad) * 4 + D_out_pad * 4 + 4
        tb = _pick_tb(B, block_b, ktiled_per_row, ktiled_fixed, budget)
        nb = _cdiv(B, tb)
        B_pad = nb * tb
        x_in = x if B_pad == B else jnp.pad(x, ((0, B_pad - B), (0, 0)))
        footprint = ktiled_fixed + tb * ktiled_per_row
        vmem_limit = int(min(hw_budget, max(32 * 1024 * 1024, 2 * footprint)))

        out = pl.pallas_call(
            _hadamard_proj_kernel_ktiled,
            out_shape=jax.ShapeDtypeStruct((B_pad, D_out_pad), out_dtype),
            grid=(nb, nk),
            in_specs=[
                pl.BlockSpec(memory_space=pltpu.SMEM),                   # -scale
                pl.BlockSpec((tb, tk), lambda i, k: (i, k)),             # x tile
                pl.BlockSpec((tk, D_out_pad), lambda i, k: (k, 0)),      # W^T tile
                pl.BlockSpec((1, D_out_pad), lambda i, k: (0, 0)),       # bias
            ],
            out_specs=pl.BlockSpec((tb, D_out_pad), lambda i, k: (i, 0)),
            scratch_shapes=[pltpu.VMEM((tb, D_out_pad), jnp.float32),
                            pltpu.VMEM((tb, 1), jnp.float32)],
            compiler_params=pltpu.CompilerParams(
                dimension_semantics=("parallel", "arbitrary"),
                vmem_limit_bytes=vmem_limit),
        )(neg_scale, x_in, w_t, bias_p)

    if B_pad != B or D_out_pad != output_size:
        out = out[:B, :output_size]
    if len(orig_shape) != 2:
        out = out.reshape(orig_shape[:-1] + (output_size,))
    return out


# --------------------------------------------------------------------------- #
# Module (forward only)
# --------------------------------------------------------------------------- #
class HadamardProjTPU:
    """Forward-only Pallas TPU port of the PyTorch HadamardProj module."""

    def __init__(self, input_size, output_size, *, bias=True, fixed_scale=None,
                 key=None, weight_dtype=jnp.float32, block_b=512,
                 vmem_budget_bytes=None):
        self.input_size = int(input_size)
        self.output_size = int(output_size)

        sz = 2 ** int(math.ceil(math.log(max(input_size, output_size), 2)))
        had = _sylvester_hadamard(sz)
        w = had[:output_size, :input_size]                         # (D_out, D_in)

        d_out_pad = _round_up(output_size, 128)                    # lane-dense out
        # Transpose + zero-pad ONCE here (not per forward call).
        w_t = np.zeros((input_size, d_out_pad), np.float32)
        w_t[:, :output_size] = w.T
        self.w_t = jnp.asarray(w_t, dtype=weight_dtype)            # bf16 is exact for +-1

        init_scale = 1.0 / math.sqrt(output_size)
        scale = float(fixed_scale) if fixed_scale is not None else init_scale
        self.neg_scale = jnp.full((1, 1), -scale, jnp.float32)

        bias_np = np.zeros((1, d_out_pad), np.float32)
        if bias:
            key = jax.random.PRNGKey(0) if key is None else key
            b = jax.random.uniform(key, (output_size,), jnp.float32,
                                   minval=-init_scale, maxval=init_scale)
            bias_np[0, :output_size] = np.asarray(b)
        self.bias_p = jnp.asarray(bias_np)

        self._apply = jax.jit(functools.partial(
            _hadamard_proj_fwd, output_size=self.output_size, block_b=block_b,
            vmem_budget_bytes=vmem_budget_bytes))

    def __call__(self, x):
        return self._apply(x, self.w_t, self.bias_p, self.neg_scale)


def _reference(x, mod):
    """Pure-JAX reference mirroring the PyTorch forward."""
    w = jnp.asarray(mod.w_t, jnp.float32)[:, :mod.output_size].T   # (D_out, D_in)
    b = mod.bias_p[0, :mod.output_size]
    scale = -mod.neg_scale[0, 0]
    xf = x.astype(jnp.float32)
    norm = jnp.sqrt(jnp.sum(xf * xf, axis=-1, keepdims=True))
    xn = xf / (norm + _EPS)
    return -scale * (xn @ w.T) + b[None, :]


if __name__ == "__main__":
    key = jax.random.PRNGKey(0)
    kx1, kb, kx2 = jax.random.split(key, 3)

    # --- Test 1: module-sized config (sz = 128) -> resident-weight path ------
    batch, input_size, output_size = 8, 128, 64
    mod = HadamardProjTPU(input_size, output_size, key=kb)
    x = jax.random.normal(kx1, (batch, input_size), dtype=jnp.float32)
    out = jax.block_until_ready(mod(x))
    ref = _reference(x, mod)
    np.testing.assert_allclose(np.asarray(out), np.asarray(ref),
                               rtol=1e-5, atol=1e-5)

    # --- Test 2: force the K-tiled streaming path (large-sz / v7x regime) ----
    mod2 = HadamardProjTPU(1024, 512, key=kb,
                           vmem_budget_bytes=2 * 1024 * 1024)  # tiny budget -> stream W^T
    x2 = jax.random.normal(kx2, (64, 1024), dtype=jnp.float32)
    out2 = jax.block_until_ready(mod2(x2))
    ref2 = _reference(x2, mod2)
    np.testing.assert_allclose(np.asarray(out2), np.asarray(ref2),
                               rtol=1e-4, atol=1e-5)   # longer contraction

    print("KERNEL_OK")
</pallas_src>

<mosaic_0001>
module attributes {stable_mosaic.version = 11 : i64} {
  func.func @_hadamard_proj_kernel_resident(%arg0: i32, %arg1: memref<1x1xf32, #tpu.memory_space<smem>>, %arg2: memref<8x128xf32, #tpu.memory_space<vmem>>, %arg3: memref<128x128xf32, #tpu.memory_space<vmem>>, %arg4: memref<1x128xf32, #tpu.memory_space<vmem>>, %arg5: memref<8x128xf32, #tpu.memory_space<vmem>>) attributes {dimension_semantics = [#tpu.dimension_semantics<parallel>], iteration_bounds = array<i64: 1>, scalar_prefetch = 0 : i64, scratch_operands = 0 : i64, tpu.core_type = #tpu.core_type<tc>, window_params = [{transform_indices = @transform_0, window_bounds = array<i64: 1, 1>}, {transform_indices = @transform_1, window_bounds = array<i64: 8, 128>}, {pipeline_mode = #tpu.pipeline_mode<synchronous>, transform_indices = @transform_2, window_bounds = array<i64: 128, 128>}, {pipeline_mode = #tpu.pipeline_mode<synchronous>, transform_indices = @transform_3, window_bounds = array<i64: 1, 128>}, {transform_indices = @transform_4, window_bounds = array<i64: 8, 128>}]} {
    %c0 = arith.constant 0 : index
    %c0_0 = arith.constant 0 : index
    %0 = vector.load %arg2[%c0, %c0_0] : memref<8x128xf32, #tpu.memory_space<vmem>>, vector<8x128xf32>
    %c0_1 = arith.constant 0 : index
    %c0_2 = arith.constant 0 : index
    %1 = vector.load %arg3[%c0_1, %c0_2] : memref<128x128xf32, #tpu.memory_space<vmem>>, vector<128x128xf32>
    %2 = arith.mulf %0, %0 : vector<8x128xf32>
    %cst = arith.constant dense<0.000000e+00> : vector<8xf32>
    %3 = vector.multi_reduction <add>, %2, %cst [1] : vector<8x128xf32> to vector<8xf32>
    %4 = vector.shape_cast %3 : vector<8xf32> to vector<8x1xf32>
    %c0_3 = arith.constant 0 : index
    %c0_4 = arith.constant 0 : index
    %5 = memref.load %arg1[%c0_3, %c0_4] : memref<1x1xf32, #tpu.memory_space<smem>>
    %6 = math.sqrt %4 : vector<8x1xf32>
    %cst_5 = arith.constant 9.99999993E-9 : f32
    %7 = vector.broadcast %cst_5 : f32 to vector<8x1xf32>
    %8 = arith.addf %6, %7 : vector<8x1xf32>
    %9 = tpu.reciprocal %8 : vector<8x1xf32> -> vector<8x1xf32>
    %10 = vector.broadcast %5 : f32 to vector<8x1xf32>
    %11 = arith.mulf %10, %9 : vector<8x1xf32>
    %cst_6 = arith.constant dense<0.000000e+00> : vector<8x128xf32>
    %12 = tpu.matmul %0, %1, %cst_6 {dimension_numbers = #tpu.dot_dimension_numbers<[1], [0], [0], [1], [0, 0, 1, 1], [], []>} : vector<8x128xf32>, vector<128x128xf32>, vector<8x128xf32> -> vector<8x128xf32>
    %13 = vector.broadcast %11 : vector<8x1xf32> to vector<8x128xf32>
    %14 = arith.mulf %12, %13 : vector<8x128xf32>
    %c0_7 = arith.constant 0 : index
    %c0_8 = arith.constant 0 : index
    %15 = vector.load %arg4[%c0_7, %c0_8] : memref<1x128xf32, #tpu.memory_space<vmem>>, vector<1x128xf32>
    %16 = vector.broadcast %15 : vector<1x128xf32> to vector<8x128xf32>
    %17 = arith.addf %14, %16 : vector<8x128xf32>
    %c0_9 = arith.constant 0 : index
    %c0_10 = arith.constant 0 : index
    %18 = vector.load %arg5[%c0_9, %c0_10] : memref<8x128xf32, #tpu.memory_space<vmem>>, vector<8x128xf32>
    tpu.vector_store %arg5[%c0_9, %c0_10], %17 {strides = array<i32>} : memref<8x128xf32, #tpu.memory_space<vmem>>, vector<8x128xf32>,
    return
  }
  func.func @transform_0(%arg0: i32) -> (i32, i32) {
    %c0_i32 = arith.constant 0 : i32
    %c0_i32_0 = arith.constant 0 : i32
    %c0_i32_1 = arith.constant 0 : i32
    return %c0_i32, %c0_i32_0 : i32, i32
  }
  func.func @transform_1(%arg0: i32) -> (i32, i32) {
    %c0_i32 = arith.constant 0 : i32
    %c0_i32_0 = arith.constant 0 : i32
    return %arg0, %c0_i32 : i32, i32
  }
  func.func @transform_2(%arg0: i32) -> (i32, i32) {
    %c0_i32 = arith.constant 0 : i32
    %c0_i32_0 = arith.constant 0 : i32
    %c0_i32_1 = arith.constant 0 : i32
    return %c0_i32, %c0_i32_0 : i32, i32
  }
  func.func @transform_3(%arg0: i32) -> (i32, i32) {
    %c0_i32 = arith.constant 0 : i32
    %c0_i32_0 = arith.constant 0 : i32
    %c0_i32_1 = arith.constant 0 : i32
    return %c0_i32, %c0_i32_0 : i32, i32
  }
  func.func @transform_4(%arg0: i32) -> (i32, i32) {
    %c0_i32 = arith.constant 0 : i32
    %c0_i32_0 = arith.constant 0 : i32
    return %arg0, %c0_i32 : i32, i32
  }
}

</mosaic_0001>

<llo_original>
// kernel: _hadamard_proj_fwd.1
$region0: #{_hadamard_proj_fwd.1}
  #allocation0 [shape = 'u32[]', space=smem, size = 0x4, offset = 0x4, fixed_abs, tag = 'smem constant byte address 0x4 - core index']
  #allocation1 [shape = 'u32[144,128]{1,0:T(1,128)}', space=vmem, size = 0x12000, scoped, tag = 'internal scratch']
  #allocation2 [shape = 'f32[1,1]{1,0:T(1,128)S(6)}', space=smem, size = 0x200, scoped, tag = 'scoped memory for _hadamard_proj_fwd.1']
  %s0 = inlined_call_operand.<no memory space> [shape: f32[1,1], index: 0, kind: input, shape index: {}]
  %s1 = inlined_call_operand.hbm [shape: f32[8,128], index: 1, kind: input, shape index: {}]
  %s2 = inlined_call_operand.hbm [shape: f32[128,128], index: 2, kind: input, shape index: {}]
  %s3 = inlined_call_operand.vmem [shape: f32[1,128], index: 3, kind: input, shape index: {}]
  %s4 = inlined_call_operand.hbm [shape: f32[8,128], index: 4, kind: output, shape index: {}]
  %s5 = sld [smem:[#allocation0]]
  $region34: #{_hadamard_proj_fwd.1} parent=0
    _
  %s7 = ssub.s32 1, %s5
  %s8 = scalar_select 0, %s7, %s5
  %9 = sst [smem:[#allocation2]] %s0
  $region1: #{_hadamard_proj_fwd.1} parent=0
    #allocation3 [shape = 'u8[4096]{0}', space=vmem, size = 0x1000, scoped, tag = 'input window, operand 1, single buffered']
    #allocation4 [shape = 's32[1]{0}', space=sflag, size = 0x4, scoped, tag = 'scoped memory for _hadamard_proj_fwd.1']
    #allocation5 [shape = 's32[1]{0}', space=sflag, size = 0x4, scoped, tag = 'scoped memory for _hadamard_proj_fwd.1']
    #allocation6 [shape = 'u8[65536]{0}', space=vmem, size = 0x10000, scoped, tag = 'input window, operand 2, single buffered']
    #allocation7 [shape = 's32[1]{0}', space=sflag, size = 0x4, scoped, tag = 'scoped memory for _hadamard_proj_fwd.1']
    #allocation8 [shape = 'u8[4096]{0}', space=vmem, size = 0x1000, scoped, tag = 'output window, operand 0, single buffered']
    %10 = vsyncpa [#allocation4], 0
    %11 = vsyncpa [#allocation7], 0
    %12 = vsyncpa [#allocation5], 0
    // Predicated region
    $region2: #{_hadamard_proj_fwd.1} parent=1 // pred_check
      _
    $region3: #{_hadamard_proj_fwd.1} parent=1 // pred_check_branch
      %14 = sbr.rel (0) target = $region5
    $region4: #{_hadamard_proj_fwd.1} parent=1 // pred_region
      _
    $region5: #{_hadamard_proj_fwd.1} parent=1 // pred_fallthru
      _
    // Predicated region
    $region6: #{_hadamard_proj_fwd.1} parent=1 // pred_check
      _
    $region7: #{_hadamard_proj_fwd.1} parent=1 // pred_check_branch
      %16 = sbr.rel (0) target = $region9
    $region8: #{_hadamard_proj_fwd.1} parent=1 // pred_region
      %s18 = ssub.s32 128, 128
      %19 = vsyncadd [#allocation4], %s18
      %s21 = sshll.u32 [#allocation3], 4
      %s22 = int_to_ptr.vmem [resolvable:$true] %s21
      %24 = dma.hbm_to_vmem [thread:$0]  %s1, 128, %s22, [#allocation4]
    $region9: #{_hadamard_proj_fwd.1} parent=1 // pred_fallthru
      _
    // Predicated region
    $region10: #{_hadamard_proj_fwd.1} parent=1 // pred_check
      _
    $region11: #{_hadamard_proj_fwd.1} parent=1 // pred_check_branch
      %26 = sbr.rel (0) target = $region13
    $region12: #{_hadamard_proj_fwd.1} parent=1 // pred_region
      %s28 = ssub.s32 2048, 2048
      %29 = vsyncadd [#allocation7], %s28
      %s30 = sshll.u32 [#allocation6], 4
      %s31 = int_to_ptr.vmem [resolvable:$true] %s30
      %36 = dma.hbm_to_vmem [thread:$0]  %s2, 2048, %s31, [#allocation7], 128, 128, 8
    $region13: #{_hadamard_proj_fwd.1} parent=1 // pred_fallthru
      _
    // Predicated region
    $region14: #{_hadamard_proj_fwd.1} parent=1 // pred_check
      _
    $region15: #{_hadamard_proj_fwd.1} parent=1 // pred_check_branch
      %38 = sbr.rel (0) target = $region17
    $region16: #{_hadamard_proj_fwd.1} parent=1 // pred_region
      _
    $region17: #{_hadamard_proj_fwd.1} parent=1 // pred_fallthru
      _
    // Predicated region
    $region18: #{_hadamard_proj_fwd.1} parent=1 // pred_check
      _
    $region19: #{_hadamard_proj_fwd.1} parent=1 // pred_check_branch
      %40 = sbr.rel (0) target = $region21
    $region20: #{_hadamard_proj_fwd.1} parent=1 // pred_region
      %41 = dma.done [#allocation4], 128
    $region21: #{_hadamard_proj_fwd.1} parent=1 // pred_fallthru
      _
    // Predicated region
    $region22: #{_hadamard_proj_fwd.1} parent=1 // pred_check
      _
    $region23: #{_hadamard_proj_fwd.1} parent=1 // pred_check_branch
      %43 = sbr.rel (0) target = $region25
    $region24: #{_hadamard_proj_fwd.1} parent=1 // pred_region
      %44 = dma.done [#allocation7], 2048
    $region25: #{_hadamard_proj_fwd.1} parent=1 // pred_fallthru
      _
    %v45 = vld [vmem:[#allocation3] sm:$0xff]
    %v46 = vld [vmem:[#allocation6] sm:$0xff]
    %v47 = vld [vmem:[#allocation6 + $0x8] sm:$0xff]
    %v48 = vld [vmem:[#allocation6 + $0x10] sm:$0xff]
    %v49 = vld [vmem:[#allocation6 + $0x18] sm:$0xff]
    %v50 = vld [vmem:[#allocation6 + $0x20] sm:$0xff]
    %v51 = vld [vmem:[#allocation6 + $0x28] sm:$0xff]
    %v52 = vld [vmem:[#allocation6 + $0x30] sm:$0xff]
    %v53 = vld [vmem:[#allocation6 + $0x38] sm:$0xff]
    %v54 = vld [vmem:[#allocation6 + $0x40] sm:$0xff]
    %v55 = vld [vmem:[#allocation6 + $0x48] sm:$0xff]
    %v56 = vld [vmem:[#allocation6 + $0x50] sm:$0xff]
    %v57 = vld [vmem:[#allocation6 + $0x58] sm:$0xff]
    %v58 = vld [vmem:[#allocation6 + $0x60] sm:$0xff]
    %v59 = vld [vmem:[#allocation6 + $0x68] sm:$0xff]
    %v60 = vld [vmem:[#allocation6 + $0x70] sm:$0xff]
    %v61 = vld [vmem:[#allocation6 + $0x78] sm:$0xff]
    %v62 = vmul.f32 %v45, %v45
    %63 = vadd.xlane.f32.xlu0 %v62
    %v64 = vpop.xlane.xlu0 %63
    %s65 = sld [smem:[#allocation2]]
    %v66 = vrsqrt.pop %v64
    %v67 = vmul.f32 %v64, %v66
    %vm68 = vcmp.eq.f32.partialorder %v64, inf
    %v69 = vsel %vm68, %v64, %v67
    %vm70 = vcmp.eq.f32.partialorder %v64, 0.0
    %v71 = vand.u32 %v64, 2147483648
    %v72 = vsel %vm70, %v71, %v69
    %v73 = vadd.f32 %v72, 1e-08
    %v74 = vrcp.pop %v73
    %v75 = vstv %s65
    %v76 = vmul.f32 %v75, %v74
    %77 = vmatprep.subr.mxu0 0.0
    %78 = vmatpush1.msra.mxu0 %v46
    %79 = vmatprep.subr.mxu0 0.0
    %80 = vmatpush1.msra.mxu0 %v47
    %81 = vmatprep.subr.mxu0 0.0
    %82 = vmatpush1.msra.mxu0 %v48
    %83 = vmatprep.subr.mxu0 0.0
    %84 = vmatpush1.msra.mxu0 %v49
    %85 = vmatprep.subr.mxu0 0.0
    %86 = vmatpush1.msra.mxu0 %v50
    %87 = vmatprep.subr.mxu0 0.0
    %88 = vmatpush1.msra.mxu0 %v51
    %89 = vmatprep.subr.mxu0 0.0
    %90 = vmatpush1.msra.mxu0 %v52
    %91 = vmatprep.subr.mxu0 0.0
    %92 = vmatpush1.msra.mxu0 %v53
    %93 = vmatprep.subr.mxu0 0.0
    %94 = vmatpush1.msra.mxu0 %v54
    %95 = vmatprep.subr.mxu0 0.0
    %96 = vmatpush1.msra.mxu0 %v55
    %97 = vmatprep.subr.mxu0 0.0
    %98 = vmatpush1.msra.mxu0 %v56
    %99 = vmatprep.subr.mxu0 0.0
    %100 = vmatpush1.msra.mxu0 %v57
    %101 = vmatprep.subr.mxu0 0.0
    %102 = vmatpush1.msra.mxu0 %v58
    %103 = vmatprep.subr.mxu0 0.0
    %104 = vmatpush1.msra.mxu0 %v59
    %105 = vmatprep.subr.mxu0 0.0
    %106 = vmatpush1.msra.mxu0 %v60
    %107 = vmatprep.subr.mxu0 0.0
    %108 = vmatpush1.msra.mxu0 %v61
    %109 = vmatprep.subr.mxu0 0.0
    %110 = vmatpush1.msra.mxu0 0.0
    %111 = vmatprep.subr.mxu0 0.0
    %112 = vmatpush1.msra.mxu0 0.0
    %113 = vmatprep.subr.mxu0 0.0
    %114 = vmatpush1.msra.mxu0 0.0
    %115 = vmatprep.subr.mxu0 0.0
    %116 = vmatpush1.msra.mxu0 0.0
    %117 = vmatprep.subr.mxu0 0.0
    %118 = vmatpush1.msra.mxu0 0.0
    %119 = vmatprep.subr.mxu0 0.0
    %120 = vmatpush1.msra.mxu0 0.0
    %121 = vmatprep.subr.mxu0 0.0
    %122 = vmatpush1.msra.mxu0 0.0
    %123 = vmatprep.subr.mxu0 0.0
    %124 = vmatpush1.msra.mxu0 0.0
    %125 = vmatprep.subr.mxu0 0.0
    %126 = vmatpush1.msra.mxu0 0.0
    %127 = vmatprep.subr.mxu0 0.0
    %128 = vmatpush1.msra.mxu0 0.0
    %129 = vmatprep.subr.mxu0 0.0
    %130 = vmatpush1.msra.mxu0 0.0
    %131 = vmatprep.subr.mxu0 0.0
    %132 = vmatpush1.msra.mxu0 0.0
    %133 = vmatprep.subr.mxu0 0.0
    %134 = vmatpush1.msra.mxu0 0.0
    %135 = vmatprep.subr.mxu0 0.0
    %136 = vmatpush1.msra.mxu0 0.0
    %137 = vmatprep.subr.mxu0 0.0
    %138 = vmatpush1.msra.mxu0 0.0
    %139 = vmatprep.subr.mxu0 0.0
    %140 = vmatpush1.msra.mxu0 0.0
    %141 = vmatprep.mubr.f32.mxu0 0.0
    %142 = vmatmul.mubr.f32.gmra.mrb[0].mxu0 %v45
    %v143 = vpop.f32.mrb[0].mxu0
    %v144 = vadd.f32 0.0, %v143
    %v145 = vpop.f32.mrb[0].mxu0
    %146 = vdwg.mxu0
    %v147 = vmul.f32 %v144, %v76
    %v148 = vld [vmem:[%s3] sm:$0x1]
    %v150 = vlaneseq
    %v151 = vshrl.u32 %v150, 7
    %v152 = vsub.s32 0, %v151
    %v153 = vrot.slane %v148, %v152
    %v155 = vadd.f32 %v147, %v153
    %156 = vst [vmem:[#allocation8] sm:$0xff] %v155
    // Predicated region
    $region26: #{_hadamard_proj_fwd.1} parent=1 // pred_check
      _
    $region27: #{_hadamard_proj_fwd.1} parent=1 // pred_check_branch
      %158 = sbr.rel (0) target = $region29
    $region28: #{_hadamard_proj_fwd.1} parent=1 // pred_region
      %s160 = ssub.s32 128, 128
      %161 = vsyncadd [#allocation5], %s160
      %s163 = sshll.u32 [#allocation8], 4
      %s164 = int_to_ptr.vmem [resolvable:$true] %s163
      %166 = dma.vmem_to_hbm [thread:$0]  %s164, 128, %s4, [#allocation5]
    $region29: #{_hadamard_proj_fwd.1} parent=1 // pred_fallthru
      _
    // Predicated region
    $region30: #{_hadamard_proj_fwd.1} parent=1 // pred_check
      _
    $region31: #{_hadamard_proj_fwd.1} parent=1 // pred_check_branch
      %168 = sbr.rel (0) target = $region33
    $region32: #{_hadamard_proj_fwd.1} parent=1 // pred_region
      %169 = dma.done [#allocation5], 128
    $region33: #{_hadamard_proj_fwd.1} parent=1 // pred_fallthru
      _
    %170 = vsyncpa [#allocation4], 1
    %171 = vsyncpa [#allocation7], 1
    %172 = vsyncpa [#allocation5], 1

</llo_original>
